<compile_context>
chip_gen: v5e
topology: v5e:2x2
jax: 0.10.0
libtpu: 0.0.40
codegen_flags: <defaults>
</compile_context>

<pallas_src>
import math
import jax
import jax.numpy as jnp
from jax.experimental import pallas as pl
from jax.experimental.pallas import tpu as pltpu


def _round_up(n, m):
    return ((n + m - 1) // m) * m


def _embed_kernel(xp_ref, w_ref, pe_ref, o_ref):
    # xp_ref: (B, L+2, C)  circularly halo-padded input (halo built in wrapper)
    # w_ref : (3*C, Dp)    fused conv taps, rows tap-major, lane-padded to Dp
    # pe_ref: (L, Dp)      positional encoding slice, lane-padded to Dp
    # o_ref : (B, L, Dp)   lane-dense output (sliced back to D in wrapper)
    B, Lp2, _ = xp_ref.shape
    L = Lp2 - 2

    w = w_ref[...]                                  # (3C, Dp)
    pe = pe_ref[...].astype(jnp.float32)            # (L, Dp)

    for b in range(B):                              # B is tiny & static -> unrolled
        xp = xp_ref[b]                              # (L+2, C)
        # Circular conv, k=3, padding=1:
        #   y[l] = sum_k x[(l + k - 1) mod L] @ w[k]  ==  concat_k(xp[k:k+L]) @ w_fused
        xc = jnp.concatenate([xp[0:L], xp[1:L + 1], xp[2:L + 2]], axis=-1)  # (L, 3C)
        acc = pe + jnp.dot(xc, w, preferred_element_type=jnp.float32)       # (L, Dp)
        o_ref[b] = acc.astype(o_ref.dtype)


def data_embedding(x, w_fused, pe, d_model):
    """x: (B, L, C) f32; w_fused: (3C, Dp) f32; pe: (L, Dp) f32 -> (B, L, d_model) f32."""
    B, L, C = x.shape
    Dp = w_fused.shape[1]

    # Circular halo pad in the wrapper so the kernel body is a single fused matmul
    # per batch row; the halo would travel with each tile if L were ever tiled.
    x_pad = jnp.concatenate([x[:, -1:, :], x, x[:, :1, :]], axis=1)    # (B, L+2, C)

    out = pl.pallas_call(
        _embed_kernel,
        out_shape=jax.ShapeDtypeStruct((B, L, Dp), x.dtype),
        grid_spec=pltpu.PrefetchScalarGridSpec(
            num_scalar_prefetch=0,
            grid=(1,),      # single step: w/pe stay resident, no per-batch step overhead
            in_specs=[
                pl.BlockSpec((B, L + 2, C), lambda i: (0, 0, 0)),
                pl.BlockSpec((3 * C, Dp), lambda i: (0, 0)),
                pl.BlockSpec((L, Dp), lambda i: (0, 0)),
            ],
            out_specs=pl.BlockSpec((B, L, Dp), lambda i: (0, 0, 0)),
        ),
        compiler_params=pltpu.CompilerParams(
            dimension_semantics=("arbitrary",)),
    )(x_pad, w_fused, pe)

    return out[..., :d_model] if Dp != d_model else out


def make_params(c_in, d_model, max_len, key):
    # Conv1d weight: torch shape (d_model, c_in, 3), kaiming_normal_ fan_in,
    # nonlinearity='leaky_relu' (negative_slope=0.01), no bias.
    fan_in = c_in * 3
    gain = math.sqrt(2.0 / (1.0 + 0.01 ** 2))
    std = gain / math.sqrt(fan_in)
    w_torch = jax.random.normal(key, (d_model, c_in, 3), dtype=jnp.float32) * std
    # (tap, c_in, d_model), then fuse taps into rows: (3*c_in, d_model), tap-major.
    w_taps = jnp.transpose(w_torch, (2, 1, 0))                    # (3, C, D)
    w_fused = w_taps.reshape(3 * c_in, d_model)                   # (3C, D)

    # PositionalEncoding buffer, reproducing the original's double assignment
    # to even columns (sin overwritten by cos; odd columns remain zero).
    position = jnp.arange(max_len, dtype=jnp.float32)[:, None]                  # (max_len, 1)
    div_term = jnp.exp(jnp.arange(0, d_model, 2, dtype=jnp.float32)
                       * (-(math.log(10000.0) / d_model)))                      # (D//2,)
    pe = jnp.zeros((max_len, d_model), dtype=jnp.float32)
    pe = pe.at[:, 0::2].set(jnp.cos(position * div_term))                       # bug-faithful

    # Lane-pad D to a multiple of 128 so in-kernel vregs and output stores are
    # lane-dense (unmasked vst); the wrapper slices the output back to d_model.
    d_pad = _round_up(d_model, 128)
    if d_pad != d_model:
        w_fused = jnp.pad(w_fused, ((0, 0), (0, d_pad - d_model)))
        pe = jnp.pad(pe, ((0, 0), (0, d_pad - d_model)))
    return w_fused, pe


if __name__ == "__main__":
    B, L, C_IN, D_MODEL = 2, 16, 4, 32
    key = jax.random.PRNGKey(0)
    kx, kw = jax.random.split(key)

    x = jax.random.normal(kx, (B, L, C_IN), dtype=jnp.float32)
    w_fused, pe_full = make_params(C_IN, D_MODEL, max_len=5000, key=kw)
    pe = pe_full[:L]                                                    # (L, Dp)

    out = data_embedding(x, w_fused, pe, D_MODEL)
    out = jax.block_until_ready(out)

    # Reference check (plain JAX): explicit circular pad + fused matmul on unpadded D.
    w_ref = w_fused[:, :D_MODEL]                                        # (3C, D)
    pe_ref = pe[:, :D_MODEL]                                            # (L, D)
    x_pad = jnp.concatenate([x[:, -1:, :], x, x[:, :1, :]], axis=1)     # (B, L+2, C)
    x_cat = jnp.concatenate([x_pad[:, k:k + L, :] for k in range(3)], axis=-1)  # (B, L, 3C)
    y_ref = jnp.einsum('blk,kd->bld', x_cat, w_ref) + pe_ref[None]
    assert out.shape == (B, L, D_MODEL)
    assert jnp.allclose(out, y_ref, atol=1e-5, rtol=1e-5)

    print("KERNEL_OK")
</pallas_src>

<mosaic_0001>
module attributes {stable_mosaic.version = 11 : i64} {
  func.func @_embed_kernel(%arg0: i32, %arg1: memref<2x18x4xf32, #tpu.memory_space<vmem>>, %arg2: memref<12x128xf32, #tpu.memory_space<vmem>>, %arg3: memref<16x128xf32, #tpu.memory_space<vmem>>, %arg4: memref<2x16x128xf32, #tpu.memory_space<vmem>>) attributes {dimension_semantics = [#tpu.dimension_semantics<arbitrary>], iteration_bounds = array<i64: 1>, scalar_prefetch = 0 : i64, scratch_operands = 0 : i64, tpu.core_type = #tpu.core_type<tc>, window_params = [{pipeline_mode = #tpu.pipeline_mode<synchronous>, transform_indices = @transform_0, window_bounds = array<i64: 2, 18, 4>}, {pipeline_mode = #tpu.pipeline_mode<synchronous>, transform_indices = @transform_1, window_bounds = array<i64: 12, 128>}, {pipeline_mode = #tpu.pipeline_mode<synchronous>, transform_indices = @transform_2, window_bounds = array<i64: 16, 128>}, {pipeline_mode = #tpu.pipeline_mode<synchronous>, transform_indices = @transform_3, window_bounds = array<i64: 2, 16, 128>}]} {
    %c0 = arith.constant 0 : index
    %c0_0 = arith.constant 0 : index
    %0 = vector.load %arg2[%c0, %c0_0] : memref<12x128xf32, #tpu.memory_space<vmem>>, vector<12x128xf32>
    %c0_1 = arith.constant 0 : index
    %c0_2 = arith.constant 0 : index
    %1 = vector.load %arg3[%c0_1, %c0_2] : memref<16x128xf32, #tpu.memory_space<vmem>>, vector<16x128xf32>
    %c0_3 = arith.constant 0 : index
    %c0_4 = arith.constant 0 : index
    %c0_5 = arith.constant 0 : index
    %2 = vector.load %arg1[%c0_3, %c0_4, %c0_5] : memref<2x18x4xf32, #tpu.memory_space<vmem>>, vector<1x18x4xf32>
    %3 = vector.shape_cast %2 : vector<1x18x4xf32> to vector<18x4xf32>
    %4 = vector.extract_strided_slice %3 {offsets = [0, 0], sizes = [16, 4], strides = [1, 1]} : vector<18x4xf32> to vector<16x4xf32>
    %5 = vector.extract_strided_slice %3 {offsets = [1, 0], sizes = [16, 4], strides = [1, 1]} : vector<18x4xf32> to vector<16x4xf32>
    %6 = vector.extract_strided_slice %3 {offsets = [2, 0], sizes = [16, 4], strides = [1, 1]} : vector<18x4xf32> to vector<16x4xf32>
    %7 = tpu.concatenate %4, %5, %6 in 1 : vector<16x4xf32>, vector<16x4xf32>, vector<16x4xf32> -> vector<16x12xf32>
    %cst = arith.constant dense<0.000000e+00> : vector<16x128xf32>
    %8 = tpu.matmul %7, %0, %cst {dimension_numbers = #tpu.dot_dimension_numbers<[1], [0], [0], [1], [0, 0, 1, 1], [], []>} : vector<16x12xf32>, vector<12x128xf32>, vector<16x128xf32> -> vector<16x128xf32>
    %9 = arith.addf %1, %8 : vector<16x128xf32>
    %c0_6 = arith.constant 0 : index
    %c0_7 = arith.constant 0 : index
    %c0_8 = arith.constant 0 : index
    %10 = vector.load %arg4[%c0_6, %c0_7, %c0_8] : memref<2x16x128xf32, #tpu.memory_space<vmem>>, vector<1x16x128xf32>
    %11 = vector.shape_cast %10 : vector<1x16x128xf32> to vector<16x128xf32>
    %12 = vector.shape_cast %9 : vector<16x128xf32> to vector<1x16x128xf32>
    tpu.vector_store %arg4[%c0_6, %c0_7, %c0_8], %12 {strides = array<i32>} : memref<2x16x128xf32, #tpu.memory_space<vmem>>, vector<1x16x128xf32>,
    %c1 = arith.constant 1 : index
    %c0_9 = arith.constant 0 : index
    %c0_10 = arith.constant 0 : index
    %13 = vector.load %arg1[%c1, %c0_9, %c0_10] : memref<2x18x4xf32, #tpu.memory_space<vmem>>, vector<1x18x4xf32>
    %14 = vector.shape_cast %13 : vector<1x18x4xf32> to vector<18x4xf32>
    %15 = vector.extract_strided_slice %14 {offsets = [0, 0], sizes = [16, 4], strides = [1, 1]} : vector<18x4xf32> to vector<16x4xf32>
    %16 = vector.extract_strided_slice %14 {offsets = [1, 0], sizes = [16, 4], strides = [1, 1]} : vector<18x4xf32> to vector<16x4xf32>
    %17 = vector.extract_strided_slice %14 {offsets = [2, 0], sizes = [16, 4], strides = [1, 1]} : vector<18x4xf32> to vector<16x4xf32>
    %18 = tpu.concatenate %15, %16, %17 in 1 : vector<16x4xf32>, vector<16x4xf32>, vector<16x4xf32> -> vector<16x12xf32>
    %cst_11 = arith.constant dense<0.000000e+00> : vector<16x128xf32>
    %19 = tpu.matmul %18, %0, %cst_11 {dimension_numbers = #tpu.dot_dimension_numbers<[1], [0], [0], [1], [0, 0, 1, 1], [], []>} : vector<16x12xf32>, vector<12x128xf32>, vector<16x128xf32> -> vector<16x128xf32>
    %20 = arith.addf %1, %19 : vector<16x128xf32>
    %c1_12 = arith.constant 1 : index
    %c0_13 = arith.constant 0 : index
    %c0_14 = arith.constant 0 : index
    %21 = vector.load %arg4[%c1_12, %c0_13, %c0_14] : memref<2x16x128xf32, #tpu.memory_space<vmem>>, vector<1x16x128xf32>
    %22 = vector.shape_cast %21 : vector<1x16x128xf32> to vector<16x128xf32>
    %23 = vector.shape_cast %20 : vector<16x128xf32> to vector<1x16x128xf32>
    tpu.vector_store %arg4[%c1_12, %c0_13, %c0_14], %23 {strides = array<i32>} : memref<2x16x128xf32, #tpu.memory_space<vmem>>, vector<1x16x128xf32>,
    return
  }
  func.func @transform_0(%arg0: i32) -> (i32, i32, i32) {
    %c0_i32 = arith.constant 0 : i32
    %c0_i32_0 = arith.constant 0 : i32
    %c0_i32_1 = arith.constant 0 : i32
    %c0_i32_2 = arith.constant 0 : i32
    return %c0_i32, %c0_i32_0, %c0_i32_1 : i32, i32, i32
  }
  func.func @transform_1(%arg0: i32) -> (i32, i32) {
    %c0_i32 = arith.constant 0 : i32
    %c0_i32_0 = arith.constant 0 : i32
    %c0_i32_1 = arith.constant 0 : i32
    return %c0_i32, %c0_i32_0 : i32, i32
  }
  func.func @transform_2(%arg0: i32) -> (i32, i32) {
    %c0_i32 = arith.constant 0 : i32
    %c0_i32_0 = arith.constant 0 : i32
    %c0_i32_1 = arith.constant 0 : i32
    return %c0_i32, %c0_i32_0 : i32, i32
  }
  func.func @transform_3(%arg0: i32) -> (i32, i32, i32) {
    %c0_i32 = arith.constant 0 : i32
    %c0_i32_0 = arith.constant 0 : i32
    %c0_i32_1 = arith.constant 0 : i32
    %c0_i32_2 = arith.constant 0 : i32
    return %c0_i32, %c0_i32_0, %c0_i32_1 : i32, i32, i32
  }
}

</mosaic_0001>

<llo_original>
// kernel: tpu_custom_call.1
$region0: #{tpu_custom_call.1}
  #allocation0 [shape = 'u32[]', space=smem, size = 0x4, offset = 0x4, fixed_abs, tag = 'smem constant byte address 0x4 - core index']
  #allocation1 [shape = 'u32[72,128]{1,0:T(1,128)}', space=vmem, size = 0x9000, scoped, tag = 'internal scratch']
  %s0 = inlined_call_operand.vmem [shape: f32[2,18,4], index: 0, kind: input, shape index: {}]
  %s1 = inlined_call_operand.vmem [shape: f32[12,128], index: 1, kind: input, shape index: {}]
  %s2 = inlined_call_operand.vmem [shape: f32[16,128], index: 2, kind: input, shape index: {}]
  %s3 = inlined_call_operand.hbm [shape: f32[2,16,128], index: 3, kind: output, shape index: {}]
  %s4 = sld [smem:[#allocation0]]
  $region22: #{tpu_custom_call.1} parent=0
    _
  %s6 = ssub.s32 1, %s4
  %s7 = scalar_select 0, %s6, %s4
  $region1: #{tpu_custom_call.1} parent=0
    #allocation2 [shape = 'u8[16384]{0}', space=vmem, size = 0x4000, scoped, tag = 'output window, operand 0, single buffered']
    #allocation3 [shape = 's32[1]{0}', space=sflag, size = 0x4, scoped, tag = 'scoped memory for tpu_custom_call.1']
    %8 = vsyncpa [#allocation3], 0
    // Predicated region
    $region2: #{tpu_custom_call.1} parent=1 // pred_check
      _
    $region3: #{tpu_custom_call.1} parent=1 // pred_check_branch
      %10 = sbr.rel (0) target = $region5
    $region4: #{tpu_custom_call.1} parent=1 // pred_region
      _
    $region5: #{tpu_custom_call.1} parent=1 // pred_fallthru
      _
    // Predicated region
    $region6: #{tpu_custom_call.1} parent=1 // pred_check
      _
    $region7: #{tpu_custom_call.1} parent=1 // pred_check_branch
      %12 = sbr.rel (0) target = $region9
    $region8: #{tpu_custom_call.1} parent=1 // pred_region
      _
    $region9: #{tpu_custom_call.1} parent=1 // pred_fallthru
      _
    // Predicated region
    $region10: #{tpu_custom_call.1} parent=1 // pred_check
      _
    $region11: #{tpu_custom_call.1} parent=1 // pred_check_branch
      %14 = sbr.rel (0) target = $region13
    $region12: #{tpu_custom_call.1} parent=1 // pred_region
      _
    $region13: #{tpu_custom_call.1} parent=1 // pred_fallthru
      _
    %v15 = vld [vmem:[%s1] sm:$0xff]
    %v16 = vld [vmem:[%s1 + $0x8] sm:$0xf]
    %v17 = vld [vmem:[%s2] sm:$0xff]
    %v18 = vld [vmem:[%s2 + $0x8] sm:$0xff]
    %v19 = vld [vmem:[%s0] sm:$0xff]
    %v20 = vld [vmem:[%s0 + $0x8] sm:$0xff]
    %v21 = vld [vmem:[%s0 + $0x10] sm:$0x3]
    %vm25 = vcmask 1046528
    %v26 = vrot.slane %v19, 1
    %v27 = vrot.slane %v20, 1
    %v28 = vsel %vm25, %v26, %v27
    %v29 = vrot.slane %v21, 1
    %v30 = vsel %vm25, %v27, %v29
    %31 = vrot.lane.b32.xlu0 %v28, 4
    %v32 = vpop.permute.xlu0 %31
    %33 = vrot.lane.b32.xlu0 %v30, 4
    %v34 = vpop.permute.xlu0 %33
    %vm37 = vcmask 1045504
    %v38 = vrot.slane %v19, 2
    %v39 = vrot.slane %v20, 2
    %v40 = vsel %vm37, %v38, %v39
    %v41 = vrot.slane %v21, 2
    %v42 = vsel %vm37, %v39, %v41
    %43 = vrot.lane.b32.xlu0 %v40, 8
    %v44 = vpop.permute.xlu0 %43
    %45 = vrot.lane.b32.xlu0 %v42, 8
    %v46 = vpop.permute.xlu0 %45
    %vm49 = vcmask 31744
    %v50 = vsel %vm49, %v19, %v32
    %v51 = vsel %vm49, %v20, %v34
    %vm52 = vcmask 64512
    %v53 = vsel %vm52, %v50, %v44
    %v54 = vsel %vm52, %v51, %v46
    %vm55 = vcmask 97280
    %v57 = vsel %vm55, %v53, 0
    %v60 = vsel %vm55, %v54, 0
    %vm62 = vcmask 1043456
    %v64 = vsel %vm62, %v16, 0
    %66 = vmatpush.msra.mxu0 0.0
    %67 = vmatpush.msra.mxu0 0.0
    %68 = vmatpush.msra.mxu0 0.0
    %69 = vmatpush.msra.mxu0 0.0
    %70 = vmatpush.msra.mxu0 0.0
    %71 = vmatpush.msra.mxu0 0.0
    %72 = vmatpush.msra.mxu0 0.0
    %73 = vmatpush.msra.mxu0 0.0
    %74 = vmatpush.msra.mxu0 0.0
    %75 = vmatpush.msra.mxu0 0.0
    %76 = vmatpush.msra.mxu0 0.0
    %77 = vmatpush.msra.mxu0 0.0
    %78 = vmatpush.msra.mxu0 0.0
    %79 = vmatpush.msra.mxu0 0.0
    %80 = vmatpush.msra.mxu0 %v64
    %81 = vmatpush.msra.mxu0 %v15
    %82 = vmatmul.f32.gmra.mxu0 %v57
    %v83 = vpop.f32.mrf.mxu0
    %v84 = vadd.f32 0.0, %v83
    %85 = vmatmul.f32.gmra.mxu0 %v60
    %v86 = vpop.f32.mrf.mxu0
    %v87 = vadd.f32 0.0, %v86
    %88 = vdwg.mxu0
    %v89 = vadd.f32 %v17, %v84
    %v90 = vadd.f32 %v18, %v87
    %91 = vst [vmem:[#allocation2] sm:$0xff] %v89
    %92 = vst [vmem:[#allocation2 + $0x8] sm:$0xff] %v90
    %s93 = scalar_lea.vmem %s0, 24
    %v94 = vld [vmem:[%s93] sm:$0xff]
    %v95 = vld [vmem:[%s93 + $0x8] sm:$0xff]
    %v96 = vld [vmem:[%s93 + $0x10] sm:$0x3]
    %v100 = vrot.slane %v94, 1
    %v101 = vrot.slane %v95, 1
    %v102 = vsel %vm25, %v100, %v101
    %v103 = vrot.slane %v96, 1
    %v104 = vsel %vm25, %v101, %v103
    %105 = vrot.lane.b32.xlu0 %v102, 4
    %v106 = vpop.permute.xlu0 %105
    %107 = vrot.lane.b32.xlu0 %v104, 4
    %v108 = vpop.permute.xlu0 %107
    %v111 = vrot.slane %v94, 2
    %v112 = vrot.slane %v95, 2
    %v113 = vsel %vm37, %v111, %v112
    %v114 = vrot.slane %v96, 2
    %v115 = vsel %vm37, %v112, %v114
    %116 = vrot.lane.b32.xlu0 %v113, 8
    %v117 = vpop.permute.xlu0 %116
    %118 = vrot.lane.b32.xlu0 %v115, 8
    %v119 = vpop.permute.xlu0 %118
    %v122 = vsel %vm49, %v94, %v106
    %v123 = vsel %vm49, %v95, %v108
    %v124 = vsel %vm52, %v122, %v117
    %v125 = vsel %vm52, %v123, %v119
    %v127 = vsel %vm55, %v124, 0
    %v130 = vsel %vm55, %v125, 0
    %132 = vmatpush.msra.mxu0 0.0
    %133 = vmatpush.msra.mxu0 0.0
    %134 = vmatpush.msra.mxu0 0.0
    %135 = vmatpush.msra.mxu0 0.0
    %136 = vmatpush.msra.mxu0 0.0
    %137 = vmatpush.msra.mxu0 0.0
    %138 = vmatpush.msra.mxu0 0.0
    %139 = vmatpush.msra.mxu0 0.0
    %140 = vmatpush.msra.mxu0 0.0
    %141 = vmatpush.msra.mxu0 0.0
    %142 = vmatpush.msra.mxu0 0.0
    %143 = vmatpush.msra.mxu0 0.0
    %144 = vmatpush.msra.mxu0 0.0
    %145 = vmatpush.msra.mxu0 0.0
    %146 = vmatpush.msra.mxu0 %v64
    %147 = vmatpush.msra.mxu0 %v15
    %148 = vmatmul.f32.gmra.mxu0 %v127
    %v149 = vpop.f32.mrf.mxu0
    %v150 = vadd.f32 0.0, %v149
    %151 = vmatmul.f32.gmra.mxu0 %v130
    %v152 = vpop.f32.mrf.mxu0
    %v153 = vadd.f32 0.0, %v152
    %154 = vdwg.mxu0
    %v155 = vadd.f32 %v17, %v150
    %v156 = vadd.f32 %v18, %v153
    %s157 = scalar_lea.vmem [#allocation2], 16
    %158 = vst [vmem:[%s157] sm:$0xff] %v155
    %159 = vst [vmem:[%s157 + $0x8] sm:$0xff] %v156
    // Predicated region
    $region14: #{tpu_custom_call.1} parent=1 // pred_check
      _
    $region15: #{tpu_custom_call.1} parent=1 // pred_check_branch
      %161 = sbr.rel (0) target = $region17
    $region16: #{tpu_custom_call.1} parent=1 // pred_region
      %163 = vsyncadd [#allocation3], 0
      %s164 = sshll.u32 [#allocation2], 4
      %s165 = int_to_ptr.vmem [resolvable:$true] %s164
      %s166 = sshll.u32 %s3, 4
      %s167 = int_to_ptr.hbm [resolvable:$true] %s166
      %172 = dma.vmem_to_hbm [thread:$0]  %s165, 512, %s167, [#allocation3], 128, 128, 8
    $region17: #{tpu_custom_call.1} parent=1 // pred_fallthru
      _
    // Predicated region
    $region18: #{tpu_custom_call.1} parent=1 // pred_check
      _
    $region19: #{tpu_custom_call.1} parent=1 // pred_check_branch
      %174 = sbr.rel (0) target = $region21
    $region20: #{tpu_custom_call.1} parent=1 // pred_region
      %176 = dma.done [#allocation3], 512
    $region21: #{tpu_custom_call.1} parent=1 // pred_fallthru
      _
    %177 = vsyncpa [#allocation3], 1

</llo_original>
